<compile_context>
chip_gen: v6e
topology: v6e:2x2x1
jax: 0.10.0
libtpu: 0.0.40
codegen_flags: <defaults>
</compile_context>

<pallas_src>
import jax
import jax.numpy as jnp
from jax.experimental import pallas as pl
from jax.experimental.pallas import tpu as pltpu

D_IN, D_HID, D_OUT = 3, 10, 3

# ---- packed parameter slab layout: one (16, 128) f32 array -------------------
#   rows 0:10, lanes  0:3   : W1 (10, 3)    (PyTorch (out, in) layout, used directly)
#   rows 0:10, lane   3     : b1 (10,)
#   rows 0:10, lanes  4:14  : W2 (10, 10)
#   rows 0:10, lane   14    : b2 (10,)
#   rows 0:3 , lanes 15:25  : W3 (3, 10)
#   rows 0:3 , lane   25    : b3 (3,)
_W1_COL = 0
_B1_COL = 3
_W2_COL = 4
_B2_COL = 14
_W3_COL = 15
_B3_COL = 25
_SLAB_ROWS = 16
_LANES = 128


def pack_params(w1, b1, w2, b2, w3, b3):
    """Pack PyTorch-layout (out, in) weights + biases into one (16, 128) f32 slab."""
    p = jnp.zeros((_SLAB_ROWS, _LANES), jnp.float32)
    p = p.at[:D_HID, _W1_COL:_W1_COL + D_IN].set(w1.astype(jnp.float32))
    p = p.at[:D_HID, _B1_COL].set(b1.astype(jnp.float32))
    p = p.at[:D_HID, _W2_COL:_W2_COL + D_HID].set(w2.astype(jnp.float32))
    p = p.at[:D_HID, _B2_COL].set(b2.astype(jnp.float32))
    p = p.at[:D_OUT, _W3_COL:_W3_COL + D_HID].set(w3.astype(jnp.float32))
    p = p.at[:D_OUT, _B3_COL].set(b3.astype(jnp.float32))
    return p


def _odefunc_kernel(y_ref, p_ref, o_ref):
    # y_ref: (3, TB)  -- batch on lanes, features on sublanes.
    y = y_ref[...].astype(jnp.float32)
    P = p_ref[...]                                   # (16, 128) slab, 2 vregs

    w1 = P[:D_HID, _W1_COL:_W1_COL + D_IN]           # (10, 3)
    b1 = P[:D_HID, _B1_COL:_B1_COL + 1]              # (10, 1)
    w2 = P[:D_HID, _W2_COL:_W2_COL + D_HID]          # (10, 10)
    b2 = P[:D_HID, _B2_COL:_B2_COL + 1]              # (10, 1)
    w3 = P[:D_OUT, _W3_COL:_W3_COL + D_HID]          # (3, 10)
    b3 = P[:D_OUT, _B3_COL:_B3_COL + 1]              # (3, 1)

    # Layer 1: h = tanh(W1 @ y + b1) -- K=3 unrolled broadcast-MACs on the VPU.
    # Weight-column lane-broadcasts are batch-invariant (once per tile, 2 vregs each);
    # activation-row sublane-broadcasts replace the old 64-vreg lane extracts.
    acc = b1
    for k in range(D_IN):
        acc = acc + w1[:, k:k + 1] * y[k:k + 1, :]
    h = jnp.tanh(acc)                                # (10, TB)

    # Layer 2: g = tanh(W2 @ h + b2) -- K=10 unrolled.
    acc = b2
    for k in range(D_HID):
        acc = acc + w2[:, k:k + 1] * h[k:k + 1, :]
    g = jnp.tanh(acc)                                # (10, TB)

    # Layer 3: o = W3 @ g + b3
    acc = b3
    for k in range(D_HID):
        acc = acc + w3[:, k:k + 1] * g[k:k + 1, :]
    o_ref[...] = acc.astype(o_ref.dtype)             # (3, TB) lane-dense store


def odefunc_forward(y, packed_params, *, tb_max=512):
    """ODEFunc forward for y of shape (B, 3); packed_params from pack_params()."""
    B, F = y.shape
    assert F == D_IN
    tb_max = max(128, (tb_max // 128) * 128)

    # Layout plumbing only: (B, 3) -> (3, B) so the batch lands on lanes.
    y_t = y.T

    if B <= tb_max:
        tb = B                       # block == full array -> always a legal block
        grid = (1,)
    else:
        tb = tb_max                  # multiple of 128 -> lane-aligned tiles
        grid = (pl.cdiv(B, tb),)     # partial edge block handled by Pallas masking

    cost = pl.CostEstimate(
        flops=2 * B * (D_IN * D_HID + D_HID * D_HID + D_HID * D_OUT),
        transcendentals=2 * D_HID * B,
        bytes_accessed=4 * (y.size + packed_params.size + D_OUT * B),
    )
    out_t = pl.pallas_call(
        _odefunc_kernel,
        out_shape=jax.ShapeDtypeStruct((D_OUT, B), jnp.float32),
        grid=grid,
        in_specs=[
            pl.BlockSpec((D_IN, tb), lambda i: (0, i)),
            # constant block index -> param slab DMA'd once, stays resident in VMEM
            pl.BlockSpec((_SLAB_ROWS, _LANES), lambda i: (0, 0)),
        ],
        out_specs=pl.BlockSpec((D_OUT, tb), lambda i: (0, i)),
        compiler_params=pltpu.CompilerParams(dimension_semantics=("parallel",)),
        cost_estimate=cost,
    )(y_t, packed_params)
    return out_t.T.astype(y.dtype)


def odefunc_ref(y, w1, b1, w2, b2, w3, b3):
    h1 = jnp.tanh(y @ w1.T + b1)
    h2 = jnp.tanh(h1 @ w2.T + b2)
    return h2 @ w3.T + b3


if __name__ == "__main__":
    key = jax.random.PRNGKey(0)
    k1, k2, k3, ky, ky2 = jax.random.split(key, 5)
    # PyTorch init: weight ~ N(0, 0.1), bias = 0, weight layout (out, in).
    w1 = 0.1 * jax.random.normal(k1, (D_HID, D_IN), jnp.float32)
    w2 = 0.1 * jax.random.normal(k2, (D_HID, D_HID), jnp.float32)
    w3 = 0.1 * jax.random.normal(k3, (D_OUT, D_HID), jnp.float32)
    b1 = jnp.zeros((D_HID,), jnp.float32)
    b2 = jnp.zeros((D_HID,), jnp.float32)
    b3 = jnp.zeros((D_OUT,), jnp.float32)

    packed = pack_params(w1, b1, w2, b2, w3, b3)

    # Small batch of ODE states (dim 3) -- single-block path.
    y = jax.random.normal(ky, (8, D_IN), jnp.float32)
    out = jax.block_until_ready(odefunc_forward(y, packed))
    ref = odefunc_ref(y, w1, b1, w2, b2, w3, b3)
    assert out.shape == (8, D_OUT) and out.dtype == jnp.float32
    assert jnp.allclose(out, ref, atol=1e-5, rtol=1e-5)

    # Larger batch -- exercises the pipelined multi-tile grid (2 x 512-lane tiles).
    y2 = jax.random.normal(ky2, (1024, D_IN), jnp.float32)
    out2 = jax.block_until_ready(odefunc_forward(y2, packed))
    ref2 = odefunc_ref(y2, w1, b1, w2, b2, w3, b3)
    assert out2.shape == (1024, D_OUT)
    assert jnp.allclose(out2, ref2, atol=1e-5, rtol=1e-5)

    print("KERNEL_OK")
</pallas_src>

<mosaic_0001>
module attributes {stable_mosaic.version = 11 : i64} {
  func.func @_odefunc_kernel(%arg0: i32, %arg1: memref<3x8xf32, #tpu.memory_space<vmem>>, %arg2: memref<16x128xf32, #tpu.memory_space<vmem>>, %arg3: memref<3x8xf32, #tpu.memory_space<vmem>>) attributes {dimension_semantics = [#tpu.dimension_semantics<parallel>], iteration_bounds = array<i64: 1>, scalar_prefetch = 0 : i64, scratch_operands = 0 : i64, tpu.core_type = #tpu.core_type<tc>, window_params = [{transform_indices = @transform_0, window_bounds = array<i64: 3, 8>}, {pipeline_mode = #tpu.pipeline_mode<synchronous>, transform_indices = @transform_1, window_bounds = array<i64: 16, 128>}, {transform_indices = @transform_2, window_bounds = array<i64: 3, 8>}]} {
    %c0 = arith.constant 0 : index
    %c0_0 = arith.constant 0 : index
    %0 = vector.load %arg1[%c0, %c0_0] : memref<3x8xf32, #tpu.memory_space<vmem>>, vector<3x8xf32>
    %c0_1 = arith.constant 0 : index
    %c0_2 = arith.constant 0 : index
    %1 = vector.load %arg2[%c0_1, %c0_2] : memref<16x128xf32, #tpu.memory_space<vmem>>, vector<16x128xf32>
    %2 = vector.extract_strided_slice %1 {offsets = [0, 0], sizes = [10, 3], strides = [1, 1]} : vector<16x128xf32> to vector<10x3xf32>
    %3 = vector.extract_strided_slice %1 {offsets = [0, 3], sizes = [10, 1], strides = [1, 1]} : vector<16x128xf32> to vector<10x1xf32>
    %4 = vector.extract_strided_slice %1 {offsets = [0, 4], sizes = [10, 10], strides = [1, 1]} : vector<16x128xf32> to vector<10x10xf32>
    %5 = vector.extract_strided_slice %1 {offsets = [0, 14], sizes = [10, 1], strides = [1, 1]} : vector<16x128xf32> to vector<10x1xf32>
    %6 = vector.extract_strided_slice %1 {offsets = [0, 15], sizes = [3, 10], strides = [1, 1]} : vector<16x128xf32> to vector<3x10xf32>
    %7 = vector.extract_strided_slice %1 {offsets = [0, 25], sizes = [3, 1], strides = [1, 1]} : vector<16x128xf32> to vector<3x1xf32>
    %8 = vector.extract_strided_slice %2 {offsets = [0, 0], sizes = [10, 1], strides = [1, 1]} : vector<10x3xf32> to vector<10x1xf32>
    %9 = vector.extract_strided_slice %0 {offsets = [0, 0], sizes = [1, 8], strides = [1, 1]} : vector<3x8xf32> to vector<1x8xf32>
    %10 = vector.broadcast %8 : vector<10x1xf32> to vector<10x8xf32>
    %11 = vector.broadcast %9 : vector<1x8xf32> to vector<10x8xf32>
    %12 = arith.mulf %10, %11 : vector<10x8xf32>
    %13 = vector.broadcast %3 : vector<10x1xf32> to vector<10x8xf32>
    %14 = arith.addf %13, %12 : vector<10x8xf32>
    %15 = vector.extract_strided_slice %2 {offsets = [0, 1], sizes = [10, 1], strides = [1, 1]} : vector<10x3xf32> to vector<10x1xf32>
    %16 = vector.extract_strided_slice %0 {offsets = [1, 0], sizes = [1, 8], strides = [1, 1]} : vector<3x8xf32> to vector<1x8xf32>
    %17 = vector.broadcast %15 : vector<10x1xf32> to vector<10x8xf32>
    %18 = vector.broadcast %16 : vector<1x8xf32> to vector<10x8xf32>
    %19 = arith.mulf %17, %18 : vector<10x8xf32>
    %20 = arith.addf %14, %19 : vector<10x8xf32>
    %21 = vector.extract_strided_slice %2 {offsets = [0, 2], sizes = [10, 1], strides = [1, 1]} : vector<10x3xf32> to vector<10x1xf32>
    %22 = vector.extract_strided_slice %0 {offsets = [2, 0], sizes = [1, 8], strides = [1, 1]} : vector<3x8xf32> to vector<1x8xf32>
    %23 = vector.broadcast %21 : vector<10x1xf32> to vector<10x8xf32>
    %24 = vector.broadcast %22 : vector<1x8xf32> to vector<10x8xf32>
    %25 = arith.mulf %23, %24 : vector<10x8xf32>
    %26 = arith.addf %20, %25 : vector<10x8xf32>
    %27 = math.tanh %26 : vector<10x8xf32>
    %28 = vector.extract_strided_slice %4 {offsets = [0, 0], sizes = [10, 1], strides = [1, 1]} : vector<10x10xf32> to vector<10x1xf32>
    %29 = vector.extract_strided_slice %27 {offsets = [0, 0], sizes = [1, 8], strides = [1, 1]} : vector<10x8xf32> to vector<1x8xf32>
    %30 = vector.broadcast %28 : vector<10x1xf32> to vector<10x8xf32>
    %31 = vector.broadcast %29 : vector<1x8xf32> to vector<10x8xf32>
    %32 = arith.mulf %30, %31 : vector<10x8xf32>
    %33 = vector.broadcast %5 : vector<10x1xf32> to vector<10x8xf32>
    %34 = arith.addf %33, %32 : vector<10x8xf32>
    %35 = vector.extract_strided_slice %4 {offsets = [0, 1], sizes = [10, 1], strides = [1, 1]} : vector<10x10xf32> to vector<10x1xf32>
    %36 = vector.extract_strided_slice %27 {offsets = [1, 0], sizes = [1, 8], strides = [1, 1]} : vector<10x8xf32> to vector<1x8xf32>
    %37 = vector.broadcast %35 : vector<10x1xf32> to vector<10x8xf32>
    %38 = vector.broadcast %36 : vector<1x8xf32> to vector<10x8xf32>
    %39 = arith.mulf %37, %38 : vector<10x8xf32>
    %40 = arith.addf %34, %39 : vector<10x8xf32>
    %41 = vector.extract_strided_slice %4 {offsets = [0, 2], sizes = [10, 1], strides = [1, 1]} : vector<10x10xf32> to vector<10x1xf32>
    %42 = vector.extract_strided_slice %27 {offsets = [2, 0], sizes = [1, 8], strides = [1, 1]} : vector<10x8xf32> to vector<1x8xf32>
    %43 = vector.broadcast %41 : vector<10x1xf32> to vector<10x8xf32>
    %44 = vector.broadcast %42 : vector<1x8xf32> to vector<10x8xf32>
    %45 = arith.mulf %43, %44 : vector<10x8xf32>
    %46 = arith.addf %40, %45 : vector<10x8xf32>
    %47 = vector.extract_strided_slice %4 {offsets = [0, 3], sizes = [10, 1], strides = [1, 1]} : vector<10x10xf32> to vector<10x1xf32>
    %48 = vector.extract_strided_slice %27 {offsets = [3, 0], sizes = [1, 8], strides = [1, 1]} : vector<10x8xf32> to vector<1x8xf32>
    %49 = vector.broadcast %47 : vector<10x1xf32> to vector<10x8xf32>
    %50 = vector.broadcast %48 : vector<1x8xf32> to vector<10x8xf32>
    %51 = arith.mulf %49, %50 : vector<10x8xf32>
    %52 = arith.addf %46, %51 : vector<10x8xf32>
    %53 = vector.extract_strided_slice %4 {offsets = [0, 4], sizes = [10, 1], strides = [1, 1]} : vector<10x10xf32> to vector<10x1xf32>
    %54 = vector.extract_strided_slice %27 {offsets = [4, 0], sizes = [1, 8], strides = [1, 1]} : vector<10x8xf32> to vector<1x8xf32>
    %55 = vector.broadcast %53 : vector<10x1xf32> to vector<10x8xf32>
    %56 = vector.broadcast %54 : vector<1x8xf32> to vector<10x8xf32>
    %57 = arith.mulf %55, %56 : vector<10x8xf32>
    %58 = arith.addf %52, %57 : vector<10x8xf32>
    %59 = vector.extract_strided_slice %4 {offsets = [0, 5], sizes = [10, 1], strides = [1, 1]} : vector<10x10xf32> to vector<10x1xf32>
    %60 = vector.extract_strided_slice %27 {offsets = [5, 0], sizes = [1, 8], strides = [1, 1]} : vector<10x8xf32> to vector<1x8xf32>
    %61 = vector.broadcast %59 : vector<10x1xf32> to vector<10x8xf32>
    %62 = vector.broadcast %60 : vector<1x8xf32> to vector<10x8xf32>
    %63 = arith.mulf %61, %62 : vector<10x8xf32>
    %64 = arith.addf %58, %63 : vector<10x8xf32>
    %65 = vector.extract_strided_slice %4 {offsets = [0, 6], sizes = [10, 1], strides = [1, 1]} : vector<10x10xf32> to vector<10x1xf32>
    %66 = vector.extract_strided_slice %27 {offsets = [6, 0], sizes = [1, 8], strides = [1, 1]} : vector<10x8xf32> to vector<1x8xf32>
    %67 = vector.broadcast %65 : vector<10x1xf32> to vector<10x8xf32>
    %68 = vector.broadcast %66 : vector<1x8xf32> to vector<10x8xf32>
    %69 = arith.mulf %67, %68 : vector<10x8xf32>
    %70 = arith.addf %64, %69 : vector<10x8xf32>
    %71 = vector.extract_strided_slice %4 {offsets = [0, 7], sizes = [10, 1], strides = [1, 1]} : vector<10x10xf32> to vector<10x1xf32>
    %72 = vector.extract_strided_slice %27 {offsets = [7, 0], sizes = [1, 8], strides = [1, 1]} : vector<10x8xf32> to vector<1x8xf32>
    %73 = vector.broadcast %71 : vector<10x1xf32> to vector<10x8xf32>
    %74 = vector.broadcast %72 : vector<1x8xf32> to vector<10x8xf32>
    %75 = arith.mulf %73, %74 : vector<10x8xf32>
    %76 = arith.addf %70, %75 : vector<10x8xf32>
    %77 = vector.extract_strided_slice %4 {offsets = [0, 8], sizes = [10, 1], strides = [1, 1]} : vector<10x10xf32> to vector<10x1xf32>
    %78 = vector.extract_strided_slice %27 {offsets = [8, 0], sizes = [1, 8], strides = [1, 1]} : vector<10x8xf32> to vector<1x8xf32>
    %79 = vector.broadcast %77 : vector<10x1xf32> to vector<10x8xf32>
    %80 = vector.broadcast %78 : vector<1x8xf32> to vector<10x8xf32>
    %81 = arith.mulf %79, %80 : vector<10x8xf32>
    %82 = arith.addf %76, %81 : vector<10x8xf32>
    %83 = vector.extract_strided_slice %4 {offsets = [0, 9], sizes = [10, 1], strides = [1, 1]} : vector<10x10xf32> to vector<10x1xf32>
    %84 = vector.extract_strided_slice %27 {offsets = [9, 0], sizes = [1, 8], strides = [1, 1]} : vector<10x8xf32> to vector<1x8xf32>
    %85 = vector.broadcast %83 : vector<10x1xf32> to vector<10x8xf32>
    %86 = vector.broadcast %84 : vector<1x8xf32> to vector<10x8xf32>
    %87 = arith.mulf %85, %86 : vector<10x8xf32>
    %88 = arith.addf %82, %87 : vector<10x8xf32>
    %89 = math.tanh %88 : vector<10x8xf32>
    %90 = vector.extract_strided_slice %6 {offsets = [0, 0], sizes = [3, 1], strides = [1, 1]} : vector<3x10xf32> to vector<3x1xf32>
    %91 = vector.extract_strided_slice %89 {offsets = [0, 0], sizes = [1, 8], strides = [1, 1]} : vector<10x8xf32> to vector<1x8xf32>
    %92 = vector.broadcast %90 : vector<3x1xf32> to vector<3x8xf32>
    %93 = vector.broadcast %91 : vector<1x8xf32> to vector<3x8xf32>
    %94 = arith.mulf %92, %93 : vector<3x8xf32>
    %95 = vector.broadcast %7 : vector<3x1xf32> to vector<3x8xf32>
    %96 = arith.addf %95, %94 : vector<3x8xf32>
    %97 = vector.extract_strided_slice %6 {offsets = [0, 1], sizes = [3, 1], strides = [1, 1]} : vector<3x10xf32> to vector<3x1xf32>
    %98 = vector.extract_strided_slice %89 {offsets = [1, 0], sizes = [1, 8], strides = [1, 1]} : vector<10x8xf32> to vector<1x8xf32>
    %99 = vector.broadcast %97 : vector<3x1xf32> to vector<3x8xf32>
    %100 = vector.broadcast %98 : vector<1x8xf32> to vector<3x8xf32>
    %101 = arith.mulf %99, %100 : vector<3x8xf32>
    %102 = arith.addf %96, %101 : vector<3x8xf32>
    %103 = vector.extract_strided_slice %6 {offsets = [0, 2], sizes = [3, 1], strides = [1, 1]} : vector<3x10xf32> to vector<3x1xf32>
    %104 = vector.extract_strided_slice %89 {offsets = [2, 0], sizes = [1, 8], strides = [1, 1]} : vector<10x8xf32> to vector<1x8xf32>
    %105 = vector.broadcast %103 : vector<3x1xf32> to vector<3x8xf32>
    %106 = vector.broadcast %104 : vector<1x8xf32> to vector<3x8xf32>
    %107 = arith.mulf %105, %106 : vector<3x8xf32>
    %108 = arith.addf %102, %107 : vector<3x8xf32>
    %109 = vector.extract_strided_slice %6 {offsets = [0, 3], sizes = [3, 1], strides = [1, 1]} : vector<3x10xf32> to vector<3x1xf32>
    %110 = vector.extract_strided_slice %89 {offsets = [3, 0], sizes = [1, 8], strides = [1, 1]} : vector<10x8xf32> to vector<1x8xf32>
    %111 = vector.broadcast %109 : vector<3x1xf32> to vector<3x8xf32>
    %112 = vector.broadcast %110 : vector<1x8xf32> to vector<3x8xf32>
    %113 = arith.mulf %111, %112 : vector<3x8xf32>
    %114 = arith.addf %108, %113 : vector<3x8xf32>
    %115 = vector.extract_strided_slice %6 {offsets = [0, 4], sizes = [3, 1], strides = [1, 1]} : vector<3x10xf32> to vector<3x1xf32>
    %116 = vector.extract_strided_slice %89 {offsets = [4, 0], sizes = [1, 8], strides = [1, 1]} : vector<10x8xf32> to vector<1x8xf32>
    %117 = vector.broadcast %115 : vector<3x1xf32> to vector<3x8xf32>
    %118 = vector.broadcast %116 : vector<1x8xf32> to vector<3x8xf32>
    %119 = arith.mulf %117, %118 : vector<3x8xf32>
    %120 = arith.addf %114, %119 : vector<3x8xf32>
    %121 = vector.extract_strided_slice %6 {offsets = [0, 5], sizes = [3, 1], strides = [1, 1]} : vector<3x10xf32> to vector<3x1xf32>
    %122 = vector.extract_strided_slice %89 {offsets = [5, 0], sizes = [1, 8], strides = [1, 1]} : vector<10x8xf32> to vector<1x8xf32>
    %123 = vector.broadcast %121 : vector<3x1xf32> to vector<3x8xf32>
    %124 = vector.broadcast %122 : vector<1x8xf32> to vector<3x8xf32>
    %125 = arith.mulf %123, %124 : vector<3x8xf32>
    %126 = arith.addf %120, %125 : vector<3x8xf32>
    %127 = vector.extract_strided_slice %6 {offsets = [0, 6], sizes = [3, 1], strides = [1, 1]} : vector<3x10xf32> to vector<3x1xf32>
    %128 = vector.extract_strided_slice %89 {offsets = [6, 0], sizes = [1, 8], strides = [1, 1]} : vector<10x8xf32> to vector<1x8xf32>
    %129 = vector.broadcast %127 : vector<3x1xf32> to vector<3x8xf32>
    %130 = vector.broadcast %128 : vector<1x8xf32> to vector<3x8xf32>
    %131 = arith.mulf %129, %130 : vector<3x8xf32>
    %132 = arith.addf %126, %131 : vector<3x8xf32>
    %133 = vector.extract_strided_slice %6 {offsets = [0, 7], sizes = [3, 1], strides = [1, 1]} : vector<3x10xf32> to vector<3x1xf32>
    %134 = vector.extract_strided_slice %89 {offsets = [7, 0], sizes = [1, 8], strides = [1, 1]} : vector<10x8xf32> to vector<1x8xf32>
    %135 = vector.broadcast %133 : vector<3x1xf32> to vector<3x8xf32>
    %136 = vector.broadcast %134 : vector<1x8xf32> to vector<3x8xf32>
    %137 = arith.mulf %135, %136 : vector<3x8xf32>
    %138 = arith.addf %132, %137 : vector<3x8xf32>
    %139 = vector.extract_strided_slice %6 {offsets = [0, 8], sizes = [3, 1], strides = [1, 1]} : vector<3x10xf32> to vector<3x1xf32>
    %140 = vector.extract_strided_slice %89 {offsets = [8, 0], sizes = [1, 8], strides = [1, 1]} : vector<10x8xf32> to vector<1x8xf32>
    %141 = vector.broadcast %139 : vector<3x1xf32> to vector<3x8xf32>
    %142 = vector.broadcast %140 : vector<1x8xf32> to vector<3x8xf32>
    %143 = arith.mulf %141, %142 : vector<3x8xf32>
    %144 = arith.addf %138, %143 : vector<3x8xf32>
    %145 = vector.extract_strided_slice %6 {offsets = [0, 9], sizes = [3, 1], strides = [1, 1]} : vector<3x10xf32> to vector<3x1xf32>
    %146 = vector.extract_strided_slice %89 {offsets = [9, 0], sizes = [1, 8], strides = [1, 1]} : vector<10x8xf32> to vector<1x8xf32>
    %147 = vector.broadcast %145 : vector<3x1xf32> to vector<3x8xf32>
    %148 = vector.broadcast %146 : vector<1x8xf32> to vector<3x8xf32>
    %149 = arith.mulf %147, %148 : vector<3x8xf32>
    %150 = arith.addf %144, %149 : vector<3x8xf32>
    %c0_3 = arith.constant 0 : index
    %c0_4 = arith.constant 0 : index
    %151 = vector.load %arg3[%c0_3, %c0_4] : memref<3x8xf32, #tpu.memory_space<vmem>>, vector<3x8xf32>
    tpu.vector_store %arg3[%c0_3, %c0_4], %150 {strides = array<i32>} : memref<3x8xf32, #tpu.memory_space<vmem>>, vector<3x8xf32>,
    return
  }
  func.func @transform_0(%arg0: i32) -> (i32, i32) {
    %c0_i32 = arith.constant 0 : i32
    %c0_i32_0 = arith.constant 0 : i32
    return %c0_i32, %arg0 : i32, i32
  }
  func.func @transform_1(%arg0: i32) -> (i32, i32) {
    %c0_i32 = arith.constant 0 : i32
    %c0_i32_0 = arith.constant 0 : i32
    %c0_i32_1 = arith.constant 0 : i32
    return %c0_i32, %c0_i32_0 : i32, i32
  }
  func.func @transform_2(%arg0: i32) -> (i32, i32) {
    %c0_i32 = arith.constant 0 : i32
    %c0_i32_0 = arith.constant 0 : i32
    return %c0_i32, %arg0 : i32, i32
  }
}

</mosaic_0001>

<llo_original>
// kernel: tpu_custom_call.1
$region0: #{tpu_custom_call.1}
  #allocation0 [shape = 'u32[]', space=smem, size = 0x4, offset = 0x4, fixed_abs, tag = 'smem constant byte address 0x4 - core index']
  #allocation1 [shape = 'u32[144,128]{1,0:T(1,128)}', space=vmem, size = 0x12000, scoped, tag = 'internal scratch']
  %s0 = inlined_call_operand.hbm [shape: f32[3,8], index: 0, kind: input, shape index: {}]
  %s1 = inlined_call_operand.hbm [shape: f32[16,128], index: 1, kind: input, shape index: {}]
  %s2 = inlined_call_operand.hbm [shape: f32[3,8], index: 2, kind: output, shape index: {}]
  %s3 = sld [smem:[#allocation0]]
  $region26: #{tpu_custom_call.1} parent=0
    _
  %s5 = ssub.s32 1, %s3
  %s6 = scalar_select 0, %s5, %s3
  $region1: #{tpu_custom_call.1} parent=0
    #allocation2 [shape = 'u8[2048]{0}', space=vmem, size = 0x800, scoped, tag = 'input window, operand 0, single buffered']
    #allocation3 [shape = 's32[1]{0}', space=sflag, size = 0x4, scoped, tag = 'scoped memory for tpu_custom_call.1']
    #allocation4 [shape = 's32[1]{0}', space=sflag, size = 0x4, scoped, tag = 'scoped memory for tpu_custom_call.1']
    #allocation5 [shape = 'u8[8192]{0}', space=vmem, size = 0x2000, scoped, tag = 'input window, operand 1, single buffered']
    #allocation6 [shape = 's32[1]{0}', space=sflag, size = 0x4, scoped, tag = 'scoped memory for tpu_custom_call.1']
    #allocation7 [shape = 'u8[2048]{0}', space=vmem, size = 0x800, scoped, tag = 'output window, operand 0, single buffered']
    %7 = vsyncpa [#allocation3], 0
    %8 = vsyncpa [#allocation6], 0
    %9 = vsyncpa [#allocation4], 0
    // Predicated region
    $region2: #{tpu_custom_call.1} parent=1 // pred_check
      _
    $region3: #{tpu_custom_call.1} parent=1 // pred_check_branch
      %11 = sbr.rel (0) target = $region5
    $region4: #{tpu_custom_call.1} parent=1 // pred_region
      %s13 = ssub.s32 64, 64
      %14 = vsyncadd [#allocation3], %s13
      %s16 = sshll.u32 [#allocation2], 4
      %s17 = int_to_ptr.vmem [resolvable:$true] %s16
      %19 = dma.hbm_to_vmem [thread:$0]  %s0, 64, %s17, [#allocation3]
    $region5: #{tpu_custom_call.1} parent=1 // pred_fallthru
      _
    // Predicated region
    $region6: #{tpu_custom_call.1} parent=1 // pred_check
      _
    $region7: #{tpu_custom_call.1} parent=1 // pred_check_branch
      %21 = sbr.rel (0) target = $region9
    $region8: #{tpu_custom_call.1} parent=1 // pred_region
      %s23 = ssub.s32 256, 256
      %24 = vsyncadd [#allocation6], %s23
      %s25 = sshll.u32 [#allocation5], 4
      %s26 = int_to_ptr.vmem [resolvable:$true] %s25
      %31 = dma.hbm_to_vmem [thread:$0]  %s1, 256, %s26, [#allocation6], 128, 128, 8
    $region9: #{tpu_custom_call.1} parent=1 // pred_fallthru
      _
    // Predicated region
    $region10: #{tpu_custom_call.1} parent=1 // pred_check
      _
    $region11: #{tpu_custom_call.1} parent=1 // pred_check_branch
      %33 = sbr.rel (0) target = $region13
    $region12: #{tpu_custom_call.1} parent=1 // pred_region
      %34 = dma.done [#allocation3], 64
    $region13: #{tpu_custom_call.1} parent=1 // pred_fallthru
      _
    // Predicated region
    $region14: #{tpu_custom_call.1} parent=1 // pred_check
      _
    $region15: #{tpu_custom_call.1} parent=1 // pred_check_branch
      %36 = sbr.rel (0) target = $region17
    $region16: #{tpu_custom_call.1} parent=1 // pred_region
      %37 = dma.done [#allocation6], 256
    $region17: #{tpu_custom_call.1} parent=1 // pred_fallthru
      _
    %v38 = vld [vmem:[#allocation2] sm:$0x7]
    %v39 = vld [vmem:[#allocation5] sm:$0xff]
    %v40 = vld [vmem:[#allocation5 + $0x8] sm:$0xff]
    %42 = vset.pattern.permute.xlu0 0
    %43 = vperm.xlu0 %42, %v39
    %v44 = vpop.permute.xlu0 %43
    %47 = vset.pattern.permute.xlu0 0
    %48 = vperm.xlu0 %47, %v40
    %v49 = vpop.permute.xlu0 %48
    %v51 = vlaneseq
    %v52 = vshrl.u32 %v51, 7
    %v53 = vsub.s32 0, %v52
    %v54 = vrot.slane %v38, %v53
    %v55 = vmul.f32 %v44, %v54
    %v56 = vmul.f32 %v49, %v54
    %57 = vset.pattern.permute.xlu0 3
    %58 = vperm.xlu0 %57, %v39
    %v59 = vpop.permute.xlu0 %58
    %61 = vset.pattern.permute.xlu0 3
    %62 = vperm.xlu0 %61, %v40
    %v63 = vpop.permute.xlu0 %62
    %v65 = vadd.f32 %v59, %v55
    %v66 = vadd.f32 %v63, %v56
    %67 = vset.pattern.permute.xlu0 1
    %68 = vperm.xlu0 %67, %v39
    %v69 = vpop.permute.xlu0 %68
    %71 = vset.pattern.permute.xlu0 1
    %72 = vperm.xlu0 %71, %v40
    %v73 = vpop.permute.xlu0 %72
    %v75 = vlaneseq
    %v76 = vshrl.u32 %v75, 7
    %v77 = vsub.s32 1, %v76
    %v78 = vrot.slane %v38, %v77
    %v79 = vmul.f32 %v69, %v78
    %v80 = vmul.f32 %v73, %v78
    %v81 = vadd.f32 %v65, %v79
    %v82 = vadd.f32 %v66, %v80
    %83 = vset.pattern.permute.xlu0 2
    %84 = vperm.xlu0 %83, %v39
    %v85 = vpop.permute.xlu0 %84
    %87 = vset.pattern.permute.xlu0 2
    %88 = vperm.xlu0 %87, %v40
    %v89 = vpop.permute.xlu0 %88
    %v91 = vlaneseq
    %v92 = vshrl.u32 %v91, 7
    %v93 = vsub.s32 2, %v92
    %v94 = vrot.slane %v38, %v93
    %v95 = vmul.f32 %v85, %v94
    %v96 = vmul.f32 %v89, %v94
    %v97 = vadd.f32 %v81, %v95
    %v98 = vadd.f32 %v82, %v96
    %v99 = vtanh.pop %v97
    %v100 = vtanh.pop %v98
    %101 = vset.pattern.permute.xlu0 4
    %102 = vperm.xlu0 %101, %v39
    %v103 = vpop.permute.xlu0 %102
    %105 = vset.pattern.permute.xlu0 4
    %106 = vperm.xlu0 %105, %v40
    %v107 = vpop.permute.xlu0 %106
    %v109 = vlaneseq
    %v110 = vshrl.u32 %v109, 7
    %v111 = vsub.s32 0, %v110
    %v112 = vrot.slane %v99, %v111
    %v113 = vmul.f32 %v103, %v112
    %v114 = vmul.f32 %v107, %v112
    %115 = vset.pattern.permute.xlu0 14
    %116 = vperm.xlu0 %115, %v39
    %v117 = vpop.permute.xlu0 %116
    %119 = vset.pattern.permute.xlu0 14
    %120 = vperm.xlu0 %119, %v40
    %v121 = vpop.permute.xlu0 %120
    %v123 = vadd.f32 %v117, %v113
    %v124 = vadd.f32 %v121, %v114
    %125 = vset.pattern.permute.xlu0 5
    %126 = vperm.xlu0 %125, %v39
    %v127 = vpop.permute.xlu0 %126
    %129 = vset.pattern.permute.xlu0 5
    %130 = vperm.xlu0 %129, %v40
    %v131 = vpop.permute.xlu0 %130
    %v133 = vlaneseq
    %v134 = vshrl.u32 %v133, 7
    %v135 = vsub.s32 1, %v134
    %v136 = vrot.slane %v99, %v135
    %v137 = vmul.f32 %v127, %v136
    %v138 = vmul.f32 %v131, %v136
    %v139 = vadd.f32 %v123, %v137
    %v140 = vadd.f32 %v124, %v138
    %141 = vset.pattern.permute.xlu0 6
    %142 = vperm.xlu0 %141, %v39
    %v143 = vpop.permute.xlu0 %142
    %145 = vset.pattern.permute.xlu0 6
    %146 = vperm.xlu0 %145, %v40
    %v147 = vpop.permute.xlu0 %146
    %v149 = vlaneseq
    %v150 = vshrl.u32 %v149, 7
    %v151 = vsub.s32 2, %v150
    %v152 = vrot.slane %v99, %v151
    %v153 = vmul.f32 %v143, %v152
    %v154 = vmul.f32 %v147, %v152
    %v155 = vadd.f32 %v139, %v153
    %v156 = vadd.f32 %v140, %v154
    %157 = vset.pattern.permute.xlu0 7
    %158 = vperm.xlu0 %157, %v39
    %v159 = vpop.permute.xlu0 %158
    %161 = vset.pattern.permute.xlu0 7
    %162 = vperm.xlu0 %161, %v40
    %v163 = vpop.permute.xlu0 %162
    %v165 = vlaneseq
    %v166 = vshrl.u32 %v165, 7
    %v167 = vsub.s32 3, %v166
    %v168 = vrot.slane %v99, %v167
    %v169 = vmul.f32 %v159, %v168
    %v170 = vmul.f32 %v163, %v168
    %v171 = vadd.f32 %v155, %v169
    %v172 = vadd.f32 %v156, %v170
    %173 = vset.pattern.permute.xlu0 8
    %174 = vperm.xlu0 %173, %v39
    %v175 = vpop.permute.xlu0 %174
    %177 = vset.pattern.permute.xlu0 8
    %178 = vperm.xlu0 %177, %v40
    %v179 = vpop.permute.xlu0 %178
    %v181 = vlaneseq
    %v182 = vshrl.u32 %v181, 7
    %v183 = vsub.s32 4, %v182
    %v184 = vrot.slane %v99, %v183
    %v185 = vmul.f32 %v175, %v184
    %v186 = vmul.f32 %v179, %v184
    %v187 = vadd.f32 %v171, %v185
    %v188 = vadd.f32 %v172, %v186
    %189 = vset.pattern.permute.xlu0 9
    %190 = vperm.xlu0 %189, %v39
    %v191 = vpop.permute.xlu0 %190
    %193 = vset.pattern.permute.xlu0 9
    %194 = vperm.xlu0 %193, %v40
    %v195 = vpop.permute.xlu0 %194
    %v197 = vlaneseq
    %v198 = vshrl.u32 %v197, 7
    %v199 = vsub.s32 5, %v198
    %v200 = vrot.slane %v99, %v199
    %v201 = vmul.f32 %v191, %v200
    %v202 = vmul.f32 %v195, %v200
    %v203 = vadd.f32 %v187, %v201
    %v204 = vadd.f32 %v188, %v202
    %205 = vset.pattern.permute.xlu0 10
    %206 = vperm.xlu0 %205, %v39
    %v207 = vpop.permute.xlu0 %206
    %209 = vset.pattern.permute.xlu0 10
    %210 = vperm.xlu0 %209, %v40
    %v211 = vpop.permute.xlu0 %210
    %v213 = vlaneseq
    %v214 = vshrl.u32 %v213, 7
    %v215 = vsub.s32 6, %v214
    %v216 = vrot.slane %v99, %v215
    %v217 = vmul.f32 %v207, %v216
    %v218 = vmul.f32 %v211, %v216
    %v219 = vadd.f32 %v203, %v217
    %v220 = vadd.f32 %v204, %v218
    %221 = vset.pattern.permute.xlu0 11
    %222 = vperm.xlu0 %221, %v39
    %v223 = vpop.permute.xlu0 %222
    %225 = vset.pattern.permute.xlu0 11
    %226 = vperm.xlu0 %225, %v40
    %v227 = vpop.permute.xlu0 %226
    %v229 = vlaneseq
    %v230 = vshrl.u32 %v229, 7
    %v231 = vsub.s32 7, %v230
    %v232 = vrot.slane %v99, %v231
    %v233 = vmul.f32 %v223, %v232
    %v234 = vmul.f32 %v227, %v232
    %v235 = vadd.f32 %v219, %v233
    %v236 = vadd.f32 %v220, %v234
    %237 = vset.pattern.permute.xlu0 12
    %238 = vperm.xlu0 %237, %v39
    %v239 = vpop.permute.xlu0 %238
    %241 = vset.pattern.permute.xlu0 12
    %242 = vperm.xlu0 %241, %v40
    %v243 = vpop.permute.xlu0 %242
    %v245 = vlaneseq
    %v246 = vshrl.u32 %v245, 7
    %v247 = vsub.s32 0, %v246
    %v248 = vrot.slane %v100, %v247
    %v249 = vmul.f32 %v239, %v248
    %v250 = vmul.f32 %v243, %v248
    %v251 = vadd.f32 %v235, %v249
    %v252 = vadd.f32 %v236, %v250
    %253 = vset.pattern.permute.xlu0 13
    %254 = vperm.xlu0 %253, %v39
    %v255 = vpop.permute.xlu0 %254
    %257 = vset.pattern.permute.xlu0 13
    %258 = vperm.xlu0 %257, %v40
    %v259 = vpop.permute.xlu0 %258
    %v261 = vlaneseq
    %v262 = vshrl.u32 %v261, 7
    %v263 = vsub.s32 1, %v262
    %v264 = vrot.slane %v100, %v263
    %v265 = vmul.f32 %v255, %v264
    %v266 = vmul.f32 %v259, %v264
    %v267 = vadd.f32 %v251, %v265
    %v268 = vadd.f32 %v252, %v266
    %v269 = vtanh.pop %v267
    %v270 = vtanh.pop %v268
    %271 = vset.pattern.permute.xlu0 15
    %272 = vperm.xlu0 %271, %v39
    %v273 = vpop.permute.xlu0 %272
    %v275 = vlaneseq
    %v276 = vshrl.u32 %v275, 7
    %v277 = vsub.s32 0, %v276
    %v278 = vrot.slane %v269, %v277
    %v279 = vmul.f32 %v273, %v278
    %280 = vset.pattern.permute.xlu0 25
    %281 = vperm.xlu0 %280, %v39
    %v282 = vpop.permute.xlu0 %281
    %v284 = vadd.f32 %v282, %v279
    %285 = vset.pattern.permute.xlu0 16
    %286 = vperm.xlu0 %285, %v39
    %v287 = vpop.permute.xlu0 %286
    %v289 = vlaneseq
    %v290 = vshrl.u32 %v289, 7
    %v291 = vsub.s32 1, %v290
    %v292 = vrot.slane %v269, %v291
    %v293 = vmul.f32 %v287, %v292
    %v294 = vadd.f32 %v284, %v293
    %295 = vset.pattern.permute.xlu0 17
    %296 = vperm.xlu0 %295, %v39
    %v297 = vpop.permute.xlu0 %296
    %v299 = vlaneseq
    %v300 = vshrl.u32 %v299, 7
    %v301 = vsub.s32 2, %v300
    %v302 = vrot.slane %v269, %v301
    %v303 = vmul.f32 %v297, %v302
    %v304 = vadd.f32 %v294, %v303
    %305 = vset.pattern.permute.xlu0 18
    %306 = vperm.xlu0 %305, %v39
    %v307 = vpop.permute.xlu0 %306
    %v309 = vlaneseq
    %v310 = vshrl.u32 %v309, 7
    %v311 = vsub.s32 3, %v310
    %v312 = vrot.slane %v269, %v311
    %v313 = vmul.f32 %v307, %v312
    %v314 = vadd.f32 %v304, %v313
    %315 = vset.pattern.permute.xlu0 19
    %316 = vperm.xlu0 %315, %v39
    %v317 = vpop.permute.xlu0 %316
    %v319 = vlaneseq
    %v320 = vshrl.u32 %v319, 7
    %v321 = vsub.s32 4, %v320
    %v322 = vrot.slane %v269, %v321
    %v323 = vmul.f32 %v317, %v322
    %v324 = vadd.f32 %v314, %v323
    %325 = vset.pattern.permute.xlu0 20
    %326 = vperm.xlu0 %325, %v39
    %v327 = vpop.permute.xlu0 %326
    %v329 = vlaneseq
    %v330 = vshrl.u32 %v329, 7
    %v331 = vsub.s32 5, %v330
    %v332 = vrot.slane %v269, %v331
    %v333 = vmul.f32 %v327, %v332
    %v334 = vadd.f32 %v324, %v333
    %335 = vset.pattern.permute.xlu0 21
    %336 = vperm.xlu0 %335, %v39
    %v337 = vpop.permute.xlu0 %336
    %v339 = vlaneseq
    %v340 = vshrl.u32 %v339, 7
    %v341 = vsub.s32 6, %v340
    %v342 = vrot.slane %v269, %v341
    %v343 = vmul.f32 %v337, %v342
    %v344 = vadd.f32 %v334, %v343
    %345 = vset.pattern.permute.xlu0 22
    %346 = vperm.xlu0 %345, %v39
    %v347 = vpop.permute.xlu0 %346
    %v349 = vlaneseq
    %v350 = vshrl.u32 %v349, 7
    %v351 = vsub.s32 7, %v350
    %v352 = vrot.slane %v269, %v351
    %v353 = vmul.f32 %v347, %v352
    %v354 = vadd.f32 %v344, %v353
    %355 = vset.pattern.permute.xlu0 23
    %356 = vperm.xlu0 %355, %v39
    %v357 = vpop.permute.xlu0 %356
    %v359 = vlaneseq
    %v360 = vshrl.u32 %v359, 7
    %v361 = vsub.s32 0, %v360
    %v362 = vrot.slane %v270, %v361
    %v363 = vmul.f32 %v357, %v362
    %v364 = vadd.f32 %v354, %v363
    %365 = vset.pattern.permute.xlu0 24
    %366 = vperm.xlu0 %365, %v39
    %v367 = vpop.permute.xlu0 %366
    %v369 = vlaneseq
    %v370 = vshrl.u32 %v369, 7
    %v371 = vsub.s32 1, %v370
    %v372 = vrot.slane %v270, %v371
    %v373 = vmul.f32 %v367, %v372
    %v374 = vadd.f32 %v364, %v373
    %vm375 = vcmask 59392
    %376 = vst.msk [vmem:[#allocation7] sm:$0x7] %vm375, %v374
    // Predicated region
    $region18: #{tpu_custom_call.1} parent=1 // pred_check
      _
    $region19: #{tpu_custom_call.1} parent=1 // pred_check_branch
      %378 = sbr.rel (0) target = $region21
    $region20: #{tpu_custom_call.1} parent=1 // pred_region
      %s380 = ssub.s32 64, 64
      %381 = vsyncadd [#allocation4], %s380
      %s383 = sshll.u32 [#allocation7], 4
      %s384 = int_to_ptr.vmem [resolvable:$true] %s383
      %386 = dma.vmem_to_hbm [thread:$0]  %s384, 64, %s2, [#allocation4]
    $region21: #{tpu_custom_call.1} parent=1 // pred_fallthru
      _
    // Predicated region
    $region22: #{tpu_custom_call.1} parent=1 // pred_check
      _
    $region23: #{tpu_custom_call.1} parent=1 // pred_check_branch
      %388 = sbr.rel (0) target = $region25
    $region24: #{tpu_custom_call.1} parent=1 // pred_region
      %389 = dma.done [#allocation4], 64
    $region25: #{tpu_custom_call.1} parent=1 // pred_fallthru
      _
    %390 = vsyncpa [#allocation3], 1
    %391 = vsyncpa [#allocation6], 1
    %392 = vsyncpa [#allocation4], 1

</llo_original>
